<compile_context>
chip_gen: v7x
topology: tpu7x:2x2x1
jax: 0.10.0
libtpu: 0.0.40
codegen_flags: <defaults>
</compile_context>

<pallas_src>
import math

import jax
import jax.numpy as jnp
import numpy as np
from jax import lax
from jax.experimental import pallas as pl
from jax.experimental.pallas import tpu as pltpu


# ----------------------------------------------------------------------------
# Generation-aware configuration
# ----------------------------------------------------------------------------
def _tpu_config():
    """VMEM budget + tile preferences derived from the actual chip."""
    try:
        vmem_cap = int(pltpu.get_tpu_info().vmem_capacity_bytes)
    except Exception:
        vmem_cap = 64 * 1024 * 1024            # conservative: assume v7x-sized VMEM
    # Leave headroom for double-buffering + compiler scratch.
    vmem_limit = min(vmem_cap * 3 // 4, 112 * 1024 * 1024)
    if vmem_cap >= 100 * 1024 * 1024:          # v5e / v6e: 128 MiB per core
        lin_prefs = (1024, 512, 256, 128)
    else:                                      # v7x: 64 MiB per core -> cap at 512
        lin_prefs = (512, 256, 128)
    tq_prefs = (512, 256, 128)
    # TODO(synk): prefer tkv=128 on v5e (4x128 MXU) once chip-version detection is wired up.
    tkv_prefs = (256, 128)
    return vmem_limit, lin_prefs, tq_prefs, tkv_prefs


def _pick_tile(dim, prefs, align):
    """Largest preferred tile that divides `dim`; else an `align`-multiple divisor; else
    the full extent (always layout-legal)."""
    for p in prefs:
        if dim % p == 0:
            return p
    if dim <= prefs[0]:
        return dim
    for t in range(prefs[0] - align, 0, -align):
        if dim % t == 0:
            return t
    return dim  # odd huge dim: full extent (legal, but no pipelining along this axis)


# ----------------------------------------------------------------------------
# Tiled linear: out = x @ w + b
# ----------------------------------------------------------------------------
def _linear_kernel(x_ref, w_ref, b_ref, o_ref, acc_ref):
    @pl.when(pl.program_id(2) == 0)
    def _():
        acc_ref[...] = jnp.zeros_like(acc_ref)

    # bf16 MXU operands, f32 accumulation (MXU is bf16-native on v5e/v6e/v7x).
    acc_ref[...] += jnp.dot(x_ref[...].astype(jnp.bfloat16),
                            w_ref[...].astype(jnp.bfloat16),
                            preferred_element_type=jnp.float32)

    @pl.when(pl.program_id(2) == pl.num_programs(2) - 1)
    def _():
        o_ref[...] = (acc_ref[...] + b_ref[...]).astype(o_ref.dtype)


def linear(x, w, b, *, lin_prefs, vmem_limit):
    M, K = x.shape
    N = w.shape[1]
    tm = _pick_tile(M, lin_prefs, 8)
    tn = _pick_tile(N, lin_prefs, 128)
    tk = _pick_tile(K, lin_prefs, 128)
    grid = (M // tm, N // tn, K // tk)
    return pl.pallas_call(
        _linear_kernel,
        out_shape=jax.ShapeDtypeStruct((M, N), x.dtype),
        grid_spec=pltpu.PrefetchScalarGridSpec(
            num_scalar_prefetch=0,
            grid=grid,
            in_specs=[
                pl.BlockSpec((tm, tk), lambda i, j, k: (i, k)),
                pl.BlockSpec((tk, tn), lambda i, j, k: (k, j)),
                pl.BlockSpec((1, tn), lambda i, j, k: (0, j)),
            ],
            out_specs=pl.BlockSpec((tm, tn), lambda i, j, k: (i, j)),
            scratch_shapes=[pltpu.VMEM((tm, tn), jnp.float32)],
        ),
        compiler_params=pltpu.CompilerParams(
            dimension_semantics=("parallel", "parallel", "arbitrary"),
            vmem_limit_bytes=vmem_limit,
        ),
    )(x, w, b.reshape(1, N))


# ----------------------------------------------------------------------------
# Flash attention (online softmax) over the qkv activation
# ----------------------------------------------------------------------------
def _flash_kernel(q_ref, k_ref, v_ref, o_ref, m_ref, l_ref, acc_ref):
    ki = pl.program_id(3)

    @pl.when(ki == 0)
    def _():
        m_ref[...] = jnp.full_like(m_ref, -jnp.inf)
        l_ref[...] = jnp.zeros_like(l_ref)
        acc_ref[...] = jnp.zeros_like(acc_ref)

    # 1/sqrt(d_k) was folded into the q projection weights -> no per-step scale here.
    # Contract the last dims of q and k directly on the MXU (no k.T / XLU transpose),
    # with bf16 operands and f32 accumulation.
    s = lax.dot_general(q_ref[...].astype(jnp.bfloat16),
                        k_ref[...].astype(jnp.bfloat16),
                        dimension_numbers=(((1,), (1,)), ((), ())),
                        preferred_element_type=jnp.float32)          # [tq, tkv]
    # TODO(synk): additive attention-mask path not implemented (torch `if mask:` only
    # supports None); a future mask must be added to `s` here, before the row max.

    m_prev = m_ref[...]
    m_new = jnp.maximum(m_prev, jnp.max(s, axis=-1, keepdims=True))
    alpha = jnp.exp(m_prev - m_new)                                   # f32 VPU/EUP math
    p = jnp.exp(s - m_new)
    l_ref[...] = alpha * l_ref[...] + jnp.sum(p, axis=-1, keepdims=True)
    acc_ref[...] = alpha * acc_ref[...] + jnp.dot(
        p.astype(jnp.bfloat16), v_ref[...].astype(jnp.bfloat16),
        preferred_element_type=jnp.float32)
    m_ref[...] = m_new

    @pl.when(ki == pl.num_programs(3) - 1)
    def _():
        o_ref[...] = (acc_ref[...] / l_ref[...]).astype(o_ref.dtype)


def flash_attention(qkv, batch_size, seq_len, num_heads, *, tq_prefs, tkv_prefs, vmem_limit):
    """qkv: packed [B*S, 3*D] activation (columns grouped [H, 3, hd]). Returns [B,H,S,hd]."""
    B, S, H = batch_size, seq_len, num_heads
    D3 = qkv.shape[1]
    hd = D3 // (3 * H)

    tq = _pick_tile(S, tq_prefs, 8)
    tkv = _pick_tile(S, tkv_prefs, 8)
    nq, nk = S // tq, S // tkv
    grid = (B, H, nq, nk)

    o_spec = pl.BlockSpec((None, None, tq, hd), lambda b, h, qi, ki: (b, h, qi, 0))
    # TODO(synk): for hd < 128 the per-head output store is lane-sparse; folding
    # G = 128 // hd heads per grid step would make it lane-dense.

    if hd % 128 == 0:
        # Lane-aligned head dim: slice q/k/v column blocks straight out of the packed
        # [B*S, 3D] activation via the index_maps -> no host-side relayout / extra HBM pass.
        q_spec = pl.BlockSpec((tq, hd), lambda b, h, qi, ki: (b * nq + qi, 3 * h))
        k_spec = pl.BlockSpec((tkv, hd), lambda b, h, qi, ki: (b * nk + ki, 3 * h + 1))
        v_spec = pl.BlockSpec((tkv, hd), lambda b, h, qi, ki: (b * nk + ki, 3 * h + 2))
        operands = (qkv, qkv, qkv)
    else:
        # hd not lane-aligned: one head-major relayout [B, 3H, S, hd] (axis-1 = 3*h + {q,k,v})
        # so every block's minor dim equals the full hd extent (layout-legal).
        qkv_t = jnp.transpose(qkv.reshape(B, S, H, 3, hd),
                              (0, 2, 3, 1, 4)).reshape(B, 3 * H, S, hd)
        q_spec = pl.BlockSpec((None, None, tq, hd), lambda b, h, qi, ki: (b, 3 * h, qi, 0))
        k_spec = pl.BlockSpec((None, None, tkv, hd), lambda b, h, qi, ki: (b, 3 * h + 1, ki, 0))
        v_spec = pl.BlockSpec((None, None, tkv, hd), lambda b, h, qi, ki: (b, 3 * h + 2, ki, 0))
        operands = (qkv_t, qkv_t, qkv_t)

    return pl.pallas_call(
        _flash_kernel,
        out_shape=jax.ShapeDtypeStruct((B, H, S, hd), qkv.dtype),
        grid_spec=pltpu.PrefetchScalarGridSpec(
            num_scalar_prefetch=0,
            grid=grid,
            in_specs=[q_spec, k_spec, v_spec],
            out_specs=o_spec,
            scratch_shapes=[
                pltpu.VMEM((tq, 1), jnp.float32),    # running max m
                pltpu.VMEM((tq, 1), jnp.float32),    # running denom l
                pltpu.VMEM((tq, hd), jnp.float32),   # output accumulator
            ],
        ),
        compiler_params=pltpu.CompilerParams(
            dimension_semantics=("parallel", "parallel", "parallel", "arbitrary"),
            vmem_limit_bytes=vmem_limit,
        ),
    )(*operands)


# ----------------------------------------------------------------------------
# Module wrapper
# ----------------------------------------------------------------------------
def _fold_qk_scale(w_qkv, b_qkv, num_heads):
    """Fold 1/sqrt(head_dim) into the q columns of the packed qkv projection."""
    D3 = w_qkv.shape[1]
    hd = D3 // (3 * num_heads)
    sm_scale = 1.0 / math.sqrt(hd)
    is_q_col = (jnp.arange(D3) % (3 * hd)) < hd
    scale = jnp.where(is_q_col, sm_scale, 1.0).astype(w_qkv.dtype)
    return w_qkv * scale, b_qkv * scale


def multi_head_attention(x, params, num_heads):
    """Forward pass matching MultiHeadAttention.forward (mask=None)."""
    B, S, D = x.shape
    vmem_limit, lin_prefs, tq_prefs, tkv_prefs = _tpu_config()

    w_qkv, b_qkv = _fold_qk_scale(params["w_qkv"], params["b_qkv"], num_heads)

    # qkv projection (tiled, pipelined): [B*S, D] @ [D, 3D] + b
    qkv = linear(x.reshape(B * S, D), w_qkv, b_qkv,
                 lin_prefs=lin_prefs, vmem_limit=vmem_limit)          # [B*S, 3D]

    values = flash_attention(qkv, B, S, num_heads,
                             tq_prefs=tq_prefs, tkv_prefs=tkv_prefs,
                             vmem_limit=vmem_limit)                   # [B, H, S, hd]

    # Torch's head-mixing reshape ([B,H,S,hd] -> [B,S,H*hd], no head transpose) is a free
    # row-major reinterpretation.
    values = values.reshape(B * S, D)

    out = linear(values, params["w_out"], params["b_out"],
                 lin_prefs=lin_prefs, vmem_limit=vmem_limit)          # [B*S, D]
    return out.reshape(B, S, D)


def init_params(key, d_model):
    k1, k2, k3, k4 = jax.random.split(key, 4)
    bound = 1.0 / math.sqrt(d_model)
    return {
        "w_qkv": jax.random.uniform(k1, (d_model, 3 * d_model), jnp.float32, -bound, bound),
        "b_qkv": jax.random.uniform(k2, (3 * d_model,), jnp.float32, -bound, bound),
        "w_out": jax.random.uniform(k3, (d_model, d_model), jnp.float32, -bound, bound),
        "b_out": jax.random.uniform(k4, (d_model,), jnp.float32, -bound, bound),
    }


# ----------------------------------------------------------------------------
# Pure-JAX reference (for correctness check)
# ----------------------------------------------------------------------------
def reference(x, params, num_heads):
    B, S, D = x.shape
    hd = D // num_heads
    qkv = x @ params["w_qkv"] + params["b_qkv"]
    qkv = qkv.reshape(B, S, num_heads, 3 * hd).transpose(0, 2, 1, 3)
    q, k, v = jnp.split(qkv, 3, axis=-1)
    s = jnp.einsum("bhqd,bhkd->bhqk", q, k) / math.sqrt(hd)
    p = jax.nn.softmax(s, axis=-1)
    vals = jnp.einsum("bhqk,bhkd->bhqd", p, v)
    vals = vals.reshape(B, S, num_heads * hd)   # same head-mixing reshape as the torch code
    return vals @ params["w_out"] + params["b_out"]


if __name__ == "__main__":
    B, S, D, H = 2, 8, 32, 4
    key = jax.random.PRNGKey(0)
    kx, kp = jax.random.split(key)
    x = jax.random.normal(kx, (B, S, D), dtype=jnp.float32)
    params = init_params(kp, D)

    out = multi_head_attention(x, params, H)
    out = jax.block_until_ready(out)

    ref = reference(x, params, H)
    # Tolerance loosened vs the pure-f32 version: all matmuls now run with bf16 MXU
    # operands (f32 accumulation), per the performance review.
    np.testing.assert_allclose(np.asarray(out), np.asarray(ref), rtol=2e-2, atol=2e-2)
    print("KERNEL_OK")
</pallas_src>

<mosaic_0001>
module attributes {stable_mosaic.version = 11 : i64} {
  func.func @_linear_kernel(%arg0: i32, %arg1: i32, %arg2: i32, %arg3: memref<16x32xf32, #tpu.memory_space<vmem>>, %arg4: memref<32x96xf32, #tpu.memory_space<vmem>>, %arg5: memref<1x96xf32, #tpu.memory_space<vmem>>, %arg6: memref<16x96xf32, #tpu.memory_space<vmem>>, %arg7: memref<16x96xf32, #tpu.memory_space<vmem>>) attributes {dimension_semantics = [#tpu.dimension_semantics<parallel>, #tpu.dimension_semantics<parallel>, #tpu.dimension_semantics<arbitrary>], iteration_bounds = array<i64: 1, 1, 1>, scalar_prefetch = 0 : i64, scratch_operands = 1 : i64, tpu.core_type = #tpu.core_type<tc>, window_params = [{transform_indices = @transform_0, window_bounds = array<i64: 16, 32>}, {transform_indices = @transform_1, window_bounds = array<i64: 32, 96>}, {transform_indices = @transform_2, window_bounds = array<i64: 1, 96>}, {transform_indices = @transform_3, window_bounds = array<i64: 16, 96>}]} {
    %c0_i32 = arith.constant 0 : i32
    %0 = arith.cmpi eq, %arg2, %c0_i32 : i32
    %1 = arith.extui %0 : i1 to i32
    %c0_i32_0 = arith.constant 0 : i32
    %2 = arith.cmpi ne, %1, %c0_i32_0 : i32
    scf.if %2 {
      %cst_10 = arith.constant 0.000000e+00 : f32
      %14 = vector.broadcast %cst_10 : f32 to vector<16x96xf32>
      %c0_11 = arith.constant 0 : index
      %c0_12 = arith.constant 0 : index
      %15 = vector.load %arg7[%c0_11, %c0_12] : memref<16x96xf32, #tpu.memory_space<vmem>>, vector<16x96xf32>
      tpu.vector_store %arg7[%c0_11, %c0_12], %14 {strides = array<i32>} : memref<16x96xf32, #tpu.memory_space<vmem>>, vector<16x96xf32>,
    } else {
    }
    %c0 = arith.constant 0 : index
    %c0_1 = arith.constant 0 : index
    %3 = vector.load %arg7[%c0, %c0_1] : memref<16x96xf32, #tpu.memory_space<vmem>>, vector<16x96xf32>
    %c0_2 = arith.constant 0 : index
    %c0_3 = arith.constant 0 : index
    %4 = vector.load %arg3[%c0_2, %c0_3] : memref<16x32xf32, #tpu.memory_space<vmem>>, vector<16x32xf32>
    %5 = arith.truncf %4 : vector<16x32xf32> to vector<16x32xbf16>
    %c0_4 = arith.constant 0 : index
    %c0_5 = arith.constant 0 : index
    %6 = vector.load %arg4[%c0_4, %c0_5] : memref<32x96xf32, #tpu.memory_space<vmem>>, vector<32x96xf32>
    %7 = arith.truncf %6 : vector<32x96xf32> to vector<32x96xbf16>
    %cst = arith.constant dense<0.000000e+00> : vector<16x96xf32>
    %8 = tpu.matmul %5, %7, %cst {dimension_numbers = #tpu.dot_dimension_numbers<[1], [0], [0], [1], [0, 0, 1, 1], [], []>} : vector<16x32xbf16>, vector<32x96xbf16>, vector<16x96xf32> -> vector<16x96xf32>
    %9 = arith.addf %3, %8 : vector<16x96xf32>
    %c0_6 = arith.constant 0 : index
    %c0_7 = arith.constant 0 : index
    %10 = vector.load %arg7[%c0_6, %c0_7] : memref<16x96xf32, #tpu.memory_space<vmem>>, vector<16x96xf32>
    tpu.vector_store %arg7[%c0_6, %c0_7], %9 {strides = array<i32>} : memref<16x96xf32, #tpu.memory_space<vmem>>, vector<16x96xf32>,
    %c0_i32_8 = arith.constant 0 : i32
    %11 = arith.cmpi eq, %arg2, %c0_i32_8 : i32
    %12 = arith.extui %11 : i1 to i32
    %c0_i32_9 = arith.constant 0 : i32
    %13 = arith.cmpi ne, %12, %c0_i32_9 : i32
    scf.if %13 {
      %c0_10 = arith.constant 0 : index
      %c0_11 = arith.constant 0 : index
      %14 = vector.load %arg7[%c0_10, %c0_11] : memref<16x96xf32, #tpu.memory_space<vmem>>, vector<16x96xf32>
      %c0_12 = arith.constant 0 : index
      %c0_13 = arith.constant 0 : index
      %15 = vector.load %arg5[%c0_12, %c0_13] : memref<1x96xf32, #tpu.memory_space<vmem>>, vector<1x96xf32>
      %16 = vector.broadcast %15 : vector<1x96xf32> to vector<16x96xf32>
      %17 = arith.addf %14, %16 : vector<16x96xf32>
      %c0_14 = arith.constant 0 : index
      %c0_15 = arith.constant 0 : index
      %18 = vector.load %arg6[%c0_14, %c0_15] : memref<16x96xf32, #tpu.memory_space<vmem>>, vector<16x96xf32>
      tpu.vector_store %arg6[%c0_14, %c0_15], %17 {strides = array<i32>} : memref<16x96xf32, #tpu.memory_space<vmem>>, vector<16x96xf32>,
    } else {
    }
    return
  }
  func.func @transform_0(%arg0: i32, %arg1: i32, %arg2: i32) -> (i32, i32) {
    %c0_i32 = arith.constant 0 : i32
    return %arg0, %arg2 : i32, i32
  }
  func.func @transform_1(%arg0: i32, %arg1: i32, %arg2: i32) -> (i32, i32) {
    %c0_i32 = arith.constant 0 : i32
    return %arg2, %arg1 : i32, i32
  }
  func.func @transform_2(%arg0: i32, %arg1: i32, %arg2: i32) -> (i32, i32) {
    %c0_i32 = arith.constant 0 : i32
    %c0_i32_0 = arith.constant 0 : i32
    return %c0_i32, %arg1 : i32, i32
  }
  func.func @transform_3(%arg0: i32, %arg1: i32, %arg2: i32) -> (i32, i32) {
    %c0_i32 = arith.constant 0 : i32
    return %arg0, %arg1 : i32, i32
  }
}

</mosaic_0001>

<llo_original>
// kernel: tpu_custom_call.1
$region0: #{tpu_custom_call.1}
  #allocation0 [shape = 'u32[]', space=smem, size = 0x4, offset = 0x4, fixed_abs, tag = 'smem constant byte address 0x4 - core index']
  #allocation1 [shape = 'u32[144,128]{1,0:T(1,128)}', space=vmem, size = 0x12000, scoped, tag = 'internal scratch']
  #allocation2 [shape = 'f32[16,96]{1,0:T(8,128)}', space=vmem, size = 0x2000, scoped, tag = 'scratch operand']
  %s0 = inlined_call_operand.hbm [shape: f32[16,32], index: 0, kind: input, shape index: {}]
  %s1 = inlined_call_operand.hbm [shape: f32[32,96], index: 1, kind: input, shape index: {}]
  %s2 = inlined_call_operand.vmem [shape: f32[1,96], index: 2, kind: input, shape index: {}]
  %s3 = inlined_call_operand.hbm [shape: f32[16,96], index: 3, kind: output, shape index: {}]
  %s4 = sld [smem:[#allocation0]]
  $region38: #{tpu_custom_call.1} parent=0
    _
  %s6 = ssub.s32 1, %s4
  %s7 = scalar_select 0, %s6, %s4
  $region1: #{tpu_custom_call.1} parent=0
    #allocation3 [shape = 'u8[8192]{0}', space=vmem, size = 0x2000, scoped, tag = 'input window, operand 0, single buffered']
    #allocation4 [shape = 's32[1]{0}', space=sflag, size = 0x4, scoped, tag = 'scoped memory for tpu_custom_call.1']
    #allocation5 [shape = 's32[1]{0}', space=sflag, size = 0x4, scoped, tag = 'scoped memory for tpu_custom_call.1']
    #allocation6 [shape = 'u8[16384]{0}', space=vmem, size = 0x4000, scoped, tag = 'input window, operand 1, single buffered']
    #allocation7 [shape = 's32[1]{0}', space=sflag, size = 0x4, scoped, tag = 'scoped memory for tpu_custom_call.1']
    #allocation8 [shape = 'u8[8192]{0}', space=vmem, size = 0x2000, scoped, tag = 'output window, operand 0, single buffered']
    %8 = vsyncpa [#allocation4], 0
    %9 = vsyncpa [#allocation7], 0
    %10 = vsyncpa [#allocation5], 0
    // Predicated region
    $region2: #{tpu_custom_call.1} parent=1 // pred_check
      _
    $region3: #{tpu_custom_call.1} parent=1 // pred_check_branch
      %12 = sbr.rel (0) target = $region5
    $region4: #{tpu_custom_call.1} parent=1 // pred_region
      %s14 = ssub.s32 256, 256
      %15 = vsyncadd [#allocation4], %s14
      %s16 = sshll.u32 [#allocation3], 4
      %s17 = int_to_ptr.vmem [resolvable:$true] %s16
      %22 = dma.hbm_to_vmem [thread:$0]  %s0, 256, %s17, [#allocation4], 128, 128, 8
    $region5: #{tpu_custom_call.1} parent=1 // pred_fallthru
      _
    // Predicated region
    $region6: #{tpu_custom_call.1} parent=1 // pred_check
      _
    $region7: #{tpu_custom_call.1} parent=1 // pred_check_branch
      %24 = sbr.rel (0) target = $region9
    $region8: #{tpu_custom_call.1} parent=1 // pred_region
      %s26 = ssub.s32 512, 512
      %27 = vsyncadd [#allocation7], %s26
      %s28 = sshll.u32 [#allocation6], 4
      %s29 = int_to_ptr.vmem [resolvable:$true] %s28
      %34 = dma.hbm_to_vmem [thread:$0]  %s1, 512, %s29, [#allocation7], 128, 128, 8
    $region9: #{tpu_custom_call.1} parent=1 // pred_fallthru
      _
    // Predicated region
    $region10: #{tpu_custom_call.1} parent=1 // pred_check
      _
    $region11: #{tpu_custom_call.1} parent=1 // pred_check_branch
      %36 = sbr.rel (0) target = $region13
    $region12: #{tpu_custom_call.1} parent=1 // pred_region
      _
    $region13: #{tpu_custom_call.1} parent=1 // pred_fallthru
      _
    // Predicated region
    $region14: #{tpu_custom_call.1} parent=1 // pred_check
      _
    $region15: #{tpu_custom_call.1} parent=1 // pred_check_branch
      %38 = sbr.rel (0) target = $region17
    $region16: #{tpu_custom_call.1} parent=1 // pred_region
      %39 = dma.done [#allocation4], 256
    $region17: #{tpu_custom_call.1} parent=1 // pred_fallthru
      _
    // Predicated region
    $region18: #{tpu_custom_call.1} parent=1 // pred_check
      _
    $region19: #{tpu_custom_call.1} parent=1 // pred_check_branch
      %41 = sbr.rel (0) target = $region21
    $region20: #{tpu_custom_call.1} parent=1 // pred_region
      %42 = dma.done [#allocation7], 512
    $region21: #{tpu_custom_call.1} parent=1 // pred_fallthru
      _
    %p44 = scmp.eq.s32.totalorder 0, 0
    // Predicated region
    $region22: #{tpu_custom_call.1} parent=1 // pred_check
      %p45 = pneg %p44
    $region23: #{tpu_custom_call.1} parent=1 // pred_check_branch
      %47 = sbr.rel (%p45) target = $region25
    $region24: #{tpu_custom_call.1} parent=1 // pred_region
      %vm48 = vcmask 785408
      %49 = vst.msk [vmem:[#allocation2] sm:$0xff] %vm48, 0.0
      %50 = vst.msk [vmem:[#allocation2 + $0x8] sm:$0xff] %vm48, 0.0
    $region25: #{tpu_custom_call.1} parent=1 // pred_fallthru
      _
    %v51 = vld [vmem:[#allocation2] sm:$0xff]
    %v52 = vld [vmem:[#allocation2 + $0x8] sm:$0xff]
    %v53 = vld [vmem:[#allocation3] sm:$0xff]
    %v54 = vld [vmem:[#allocation3 + $0x8] sm:$0xff]
    %v55 = vpack.c.bf16 %v54, %v53
    %v56 = vld [vmem:[#allocation6] sm:$0xff]
    %v57 = vld [vmem:[#allocation6 + $0x8] sm:$0xff]
    %v58 = vld [vmem:[#allocation6 + $0x10] sm:$0xff]
    %v59 = vld [vmem:[#allocation6 + $0x18] sm:$0xff]
    %v60 = vpack.c.bf16 %v57, %v56
    %v61 = vpack.c.bf16 %v59, %v58
    %vm62 = vcmask 261120
    %v64 = vsel %vm62, %v55, 0
    %66 = vmatprep.subr.bf16.mxu0 0
    %67 = vmatpush1.bf16.msra.mxu0 %v60
    %68 = vmatprep.subr.bf16.mxu0 0
    %69 = vmatpush1.bf16.msra.mxu0 %v61
    %70 = vmatprep.subr.bf16.mxu0 0
    %71 = vmatpush1.bf16.msra.mxu0 0
    %72 = vmatprep.subr.bf16.mxu0 0
    %73 = vmatpush1.bf16.msra.mxu0 0
    %74 = vmatprep.subr.bf16.mxu0 0
    %75 = vmatpush1.bf16.msra.mxu0 0
    %76 = vmatprep.subr.bf16.mxu0 0
    %77 = vmatpush1.bf16.msra.mxu0 0
    %78 = vmatprep.subr.bf16.mxu0 0
    %79 = vmatpush1.bf16.msra.mxu0 0
    %80 = vmatprep.subr.bf16.mxu0 0
    %81 = vmatpush1.bf16.msra.mxu0 0
    %82 = vmatprep.subr.bf16.mxu0 0
    %83 = vmatpush1.bf16.msra.mxu0 0
    %84 = vmatprep.subr.bf16.mxu0 0
    %85 = vmatpush1.bf16.msra.mxu0 0
    %86 = vmatprep.subr.bf16.mxu0 0
    %87 = vmatpush1.bf16.msra.mxu0 0
    %88 = vmatprep.subr.bf16.mxu0 0
    %89 = vmatpush1.bf16.msra.mxu0 0
    %90 = vmatprep.subr.bf16.mxu0 0
    %91 = vmatpush1.bf16.msra.mxu0 0
    %92 = vmatprep.subr.bf16.mxu0 0
    %93 = vmatpush1.bf16.msra.mxu0 0
    %94 = vmatprep.subr.bf16.mxu0 0
    %95 = vmatpush1.bf16.msra.mxu0 0
    %96 = vmatprep.subr.bf16.mxu0 0
    %97 = vmatpush1.bf16.msra.mxu0 0
    %98 = vmatprep.mubr.bf16.mxu0 0
    %99 = vmatmul.mubr.bf16.gmra.mrb[0].mxu0 %v64
    %v100 = vpop.f32.mrb[0].mxu0
    %v101 = vadd.f32 0.0, %v100
    %v102 = vpop.f32.mrb[0].mxu0
    %v103 = vpop.f32.mrb[0].mxu0
    %v104 = vadd.f32 0.0, %v103
    %v105 = vpop.f32.mrb[0].mxu0
    %106 = vdwg.mxu0
    %v107 = vadd.f32 %v51, %v101
    %v108 = vadd.f32 %v52, %v104
    %vm109 = vcmask 785408
    %110 = vst.msk [vmem:[#allocation2] sm:$0xff] %vm109, %v107
    %111 = vst.msk [vmem:[#allocation2 + $0x8] sm:$0xff] %vm109, %v108
    // Predicated region
    $region26: #{tpu_custom_call.1} parent=1 // pred_check
      %p112 = pneg %p44
    $region27: #{tpu_custom_call.1} parent=1 // pred_check_branch
      %114 = sbr.rel (%p112) target = $region29
    $region28: #{tpu_custom_call.1} parent=1 // pred_region
      %v115 = vld [vmem:[#allocation2] sm:$0xff]
      %v116 = vld [vmem:[#allocation2 + $0x8] sm:$0xff]
      %v117 = vld [vmem:[%s2] sm:$0x1]
      %v119 = vlaneseq
      %v120 = vshrl.u32 %v119, 7
      %v121 = vsub.s32 0, %v120
      %v122 = vrot.slane %v117, %v121
      %v124 = vadd.f32 %v115, %v122
      %v125 = vadd.f32 %v116, %v122
      %126 = vst.msk [vmem:[#allocation8] sm:$0xff] %vm109, %v124
      %127 = vst.msk [vmem:[#allocation8 + $0x8] sm:$0xff] %vm109, %v125
    $region29: #{tpu_custom_call.1} parent=1 // pred_fallthru
      _
    // Predicated region
    $region30: #{tpu_custom_call.1} parent=1 // pred_check
      _
    $region31: #{tpu_custom_call.1} parent=1 // pred_check_branch
      %129 = sbr.rel (0) target = $region33
    $region32: #{tpu_custom_call.1} parent=1 // pred_region
      %s131 = ssub.s32 256, 256
      %132 = vsyncadd [#allocation5], %s131
      %s133 = sshll.u32 [#allocation8], 4
      %s134 = int_to_ptr.vmem [resolvable:$true] %s133
      %139 = dma.vmem_to_hbm [thread:$0]  %s134, 256, %s3, [#allocation5], 128, 128, 8
    $region33: #{tpu_custom_call.1} parent=1 // pred_fallthru
      _
    // Predicated region
    $region34: #{tpu_custom_call.1} parent=1 // pred_check
      _
    $region35: #{tpu_custom_call.1} parent=1 // pred_check_branch
      %141 = sbr.rel (0) target = $region37
    $region36: #{tpu_custom_call.1} parent=1 // pred_region
      %142 = dma.done [#allocation5], 256
    $region37: #{tpu_custom_call.1} parent=1 // pred_fallthru
      _
    %143 = vsyncpa [#allocation4], 1
    %144 = vsyncpa [#allocation7], 1
    %145 = vsyncpa [#allocation5], 1

</llo_original>
